<compile_context>
chip_gen: v5e
topology: v5e:2x2
jax: 0.10.0
libtpu: 0.0.40
codegen_flags: <defaults>
</compile_context>

<pallas_src>
import jax
import jax.numpy as jnp
import numpy as np
from jax.experimental import pallas as pl
from jax.experimental.pallas import tpu as pltpu


def _vmem_capacity_bytes() -> int:
    """Per-TensorCore VMEM capacity; conservative fallback if query fails."""
    try:
        cap = getattr(pltpu.get_tpu_info(), "vmem_capacity_bytes", None)
        if cap:
            return int(cap)
    except Exception:
        pass
    return 64 << 20  # conservative: v7x per-TensorCore VMEM


def _round_up(x: int, m: int) -> int:
    return -(-x // m) * m


def pixel_norm_2d(x: jax.Array, gain: jax.Array, bias: jax.Array,
                  *, eps: float = 1e-7) -> jax.Array:
    """Pallas TPU implementation of PixelNorm2d.forward for NCHW inputs."""
    N, C, H, W = x.shape
    HW = H * W
    dtype = x.dtype
    itemsize = dtype.itemsize

    x3 = x.reshape(N, C, HW)                         # lanes = H*W
    g3 = gain.reshape(1, C, 1).astype(jnp.float32)
    b3 = bias.reshape(1, C, 1).astype(jnp.float32)

    # --- VMEM budgeting (padding-aware, generation-aware) -------------------
    pack = max(1, 4 // itemsize)                     # sublane packing factor
    padded_c = _round_up(C, 8 * pack)                # real VMEM rows per slice
    vmem_cap = _vmem_capacity_bytes()
    usable = min((3 * vmem_cap) // 4, 96 << 20)      # ~48 MiB v7x, 96 MiB v5e/v6e
    # 2x double-buffered (in + out) blocks plus ~2 f32-block intermediates.
    denom = 4 + 2 * pack
    budget = max(1 << 20, min(8 << 20, usable // denom))   # bytes per input block

    # --- lane (H*W) tiling ---------------------------------------------------
    if HW <= 128:
        # Full-dim block; lanes are padded to 128 in VMEM (masked stores).
        # TODO(synk): a channels-on-lanes layout would give unmasked full-width
        # stores for tiny feature maps (H=W<=8); not implemented here.
        tile_hw = HW
    else:
        max_lanes = max(128, (budget // (padded_c * itemsize)) // 128 * 128)
        cap_hw = min((HW // 128) * 128, max_lanes)
        best_div = 0
        t = cap_hw
        while t >= 128:
            if HW % t == 0:
                best_div = t
                break
            t -= 128
        # Prefer an exact divisor only if it keeps tiles at least half the cap;
        # otherwise take the largest 128-multiple tile with a cdiv ragged tail.
        tile_hw = best_div if best_div >= max(128, cap_hw // 2) else cap_hw
    grid_hw = pl.cdiv(HW, tile_hw)

    # --- batch tiling --------------------------------------------------------
    slice_bytes = padded_c * _round_up(max(tile_hw, 1), 128) * itemsize
    tile_n = max(1, min(N, budget // max(slice_bytes, 1)))
    grid_n = pl.cdiv(N, tile_n)

    # --- guarantee >= 2 grid steps so both v7x TensorCores get work ----------
    if grid_n * grid_hw < 2:
        if N >= 2:
            tile_n = (tile_n + 1) // 2
            grid_n = pl.cdiv(N, tile_n)
        elif tile_hw >= 256:
            tile_hw = _round_up(tile_hw // 2, 128)
            grid_hw = pl.cdiv(HW, tile_hw)

    block_bytes = tile_n * padded_c * _round_up(max(tile_hw, 1), 128) * itemsize
    vmem_limit = max(16 << 20, min(usable, denom * block_bytes + (4 << 20)))

    def kernel(x_ref, g_ref, b_ref, o_ref):
        # Sum of squares with the f32 cast fused into the reduction; re-read
        # x_ref for the affine path instead of keeping a full f32 copy live.
        x_sq = jnp.square(x_ref[...].astype(jnp.float32))     # (tn, C, thw)
        ms = jnp.mean(x_sq, axis=1, keepdims=True)             # (tn, 1, thw)
        inv = jax.lax.rsqrt(ms + eps)                          # EUP rsqrt
        out = x_ref[...].astype(jnp.float32) * inv * g_ref[...] + b_ref[...]
        o_ref[...] = out.astype(o_ref.dtype)

    cost = pl.CostEstimate(
        flops=int(5 * N * C * HW),
        transcendentals=int(N * HW),
        bytes_accessed=int(2 * N * C * HW * itemsize + 2 * C * 4),
    )

    out3 = pl.pallas_call(
        kernel,
        out_shape=jax.ShapeDtypeStruct((N, C, HW), dtype),
        grid=(grid_n, grid_hw),
        in_specs=[
            pl.BlockSpec((tile_n, C, tile_hw), lambda i, j: (i, 0, j)),
            pl.BlockSpec((1, C, 1), lambda i, j: (0, 0, 0)),
            pl.BlockSpec((1, C, 1), lambda i, j: (0, 0, 0)),
        ],
        out_specs=pl.BlockSpec((tile_n, C, tile_hw), lambda i, j: (i, 0, j)),
        compiler_params=pltpu.CompilerParams(
            dimension_semantics=("parallel", "parallel"),
            vmem_limit_bytes=int(vmem_limit)),
        cost_estimate=cost,
    )(x3, g3, b3)

    return out3.reshape(N, C, H, W)


def _reference_pixel_norm(x: np.ndarray, gain: np.ndarray, bias: np.ndarray,
                          eps: float = 1e-7) -> np.ndarray:
    ms = np.mean(x.astype(np.float32) ** 2, axis=1, keepdims=True)
    out = x / np.sqrt(ms + eps)
    return out * gain + bias


if __name__ == "__main__":
    key = jax.random.PRNGKey(0)
    k1, k2, k3 = jax.random.split(key, 3)

    # Small NCHW input consistent with the module: batch=2, channels=4, spatial=16.
    N, C, H, W = 2, 4, 16, 16
    x = jax.random.normal(k1, (N, C, H, W), dtype=jnp.float32)
    # Torch init is ones/zeros; perturb so the affine path is actually exercised.
    gain = 1.0 + 0.1 * jax.random.normal(k2, (1, C, 1, 1), dtype=jnp.float32)
    bias = 0.1 * jax.random.normal(k3, (1, C, 1, 1), dtype=jnp.float32)

    y = jax.block_until_ready(pixel_norm_2d(x, gain, bias))

    y_ref = _reference_pixel_norm(np.asarray(x), np.asarray(gain), np.asarray(bias))
    assert y.shape == (N, C, H, W), y.shape
    np.testing.assert_allclose(np.asarray(y), y_ref, rtol=1e-5, atol=1e-5)

    print("KERNEL_OK")
</pallas_src>

<mosaic_0001>
module attributes {stable_mosaic.version = 11 : i64} {
  func.func @kernel(%arg0: i32, %arg1: i32, %arg2: memref<1x4x256xf32, #tpu.memory_space<vmem>>, %arg3: memref<1x4x1xf32, #tpu.memory_space<vmem>>, %arg4: memref<1x4x1xf32, #tpu.memory_space<vmem>>, %arg5: memref<1x4x256xf32, #tpu.memory_space<vmem>>) attributes {dimension_semantics = [#tpu.dimension_semantics<parallel>, #tpu.dimension_semantics<parallel>], iteration_bounds = array<i64: 2, 1>, scalar_prefetch = 0 : i64, scratch_operands = 0 : i64, tpu.core_type = #tpu.core_type<tc>, window_params = [{transform_indices = @transform_0, window_bounds = array<i64: 1, 4, 256>}, {pipeline_mode = #tpu.pipeline_mode<synchronous>, transform_indices = @transform_1, window_bounds = array<i64: 1, 4, 1>}, {pipeline_mode = #tpu.pipeline_mode<synchronous>, transform_indices = @transform_2, window_bounds = array<i64: 1, 4, 1>}, {transform_indices = @transform_3, window_bounds = array<i64: 1, 4, 256>}]} {
    %c0 = arith.constant 0 : index
    %c0_0 = arith.constant 0 : index
    %c0_1 = arith.constant 0 : index
    %0 = vector.load %arg2[%c0, %c0_0, %c0_1] : memref<1x4x256xf32, #tpu.memory_space<vmem>>, vector<1x4x256xf32>
    %1 = arith.mulf %0, %0 : vector<1x4x256xf32>
    %cst = arith.constant dense<0.000000e+00> : vector<1x256xf32>
    %2 = vector.multi_reduction <add>, %1, %cst [1] : vector<1x4x256xf32> to vector<1x256xf32>
    %3 = vector.shape_cast %2 : vector<1x256xf32> to vector<1x1x256xf32>
    %cst_2 = arith.constant 4.000000e+00 : f32
    %4 = vector.broadcast %cst_2 : f32 to vector<1x1x256xf32>
    %5 = arith.divf %3, %4 : vector<1x1x256xf32>
    %cst_3 = arith.constant 1.000000e-07 : f32
    %6 = vector.broadcast %cst_3 : f32 to vector<1x1x256xf32>
    %7 = arith.addf %5, %6 : vector<1x1x256xf32>
    %8 = math.rsqrt %7 : vector<1x1x256xf32>
    %c0_4 = arith.constant 0 : index
    %c0_5 = arith.constant 0 : index
    %c0_6 = arith.constant 0 : index
    %9 = vector.load %arg2[%c0_4, %c0_5, %c0_6] : memref<1x4x256xf32, #tpu.memory_space<vmem>>, vector<1x4x256xf32>
    %10 = vector.broadcast %8 : vector<1x1x256xf32> to vector<1x4x256xf32>
    %11 = arith.mulf %9, %10 : vector<1x4x256xf32>
    %c0_7 = arith.constant 0 : index
    %c0_8 = arith.constant 0 : index
    %c0_9 = arith.constant 0 : index
    %12 = vector.load %arg3[%c0_7, %c0_8, %c0_9] : memref<1x4x1xf32, #tpu.memory_space<vmem>>, vector<1x4x1xf32>
    %13 = vector.broadcast %12 : vector<1x4x1xf32> to vector<1x4x256xf32>
    %14 = arith.mulf %11, %13 : vector<1x4x256xf32>
    %c0_10 = arith.constant 0 : index
    %c0_11 = arith.constant 0 : index
    %c0_12 = arith.constant 0 : index
    %15 = vector.load %arg4[%c0_10, %c0_11, %c0_12] : memref<1x4x1xf32, #tpu.memory_space<vmem>>, vector<1x4x1xf32>
    %16 = vector.broadcast %15 : vector<1x4x1xf32> to vector<1x4x256xf32>
    %17 = arith.addf %14, %16 : vector<1x4x256xf32>
    %c0_13 = arith.constant 0 : index
    %c0_14 = arith.constant 0 : index
    %c0_15 = arith.constant 0 : index
    %18 = vector.load %arg5[%c0_13, %c0_14, %c0_15] : memref<1x4x256xf32, #tpu.memory_space<vmem>>, vector<1x4x256xf32>
    tpu.vector_store %arg5[%c0_13, %c0_14, %c0_15], %17 {strides = array<i32>} : memref<1x4x256xf32, #tpu.memory_space<vmem>>, vector<1x4x256xf32>,
    return
  }
  func.func @transform_0(%arg0: i32, %arg1: i32) -> (i32, i32, i32) {
    %c0_i32 = arith.constant 0 : i32
    %c0_i32_0 = arith.constant 0 : i32
    return %arg0, %c0_i32, %arg1 : i32, i32, i32
  }
  func.func @transform_1(%arg0: i32, %arg1: i32) -> (i32, i32, i32) {
    %c0_i32 = arith.constant 0 : i32
    %c0_i32_0 = arith.constant 0 : i32
    %c0_i32_1 = arith.constant 0 : i32
    %c0_i32_2 = arith.constant 0 : i32
    return %c0_i32, %c0_i32_0, %c0_i32_1 : i32, i32, i32
  }
  func.func @transform_2(%arg0: i32, %arg1: i32) -> (i32, i32, i32) {
    %c0_i32 = arith.constant 0 : i32
    %c0_i32_0 = arith.constant 0 : i32
    %c0_i32_1 = arith.constant 0 : i32
    %c0_i32_2 = arith.constant 0 : i32
    return %c0_i32, %c0_i32_0, %c0_i32_1 : i32, i32, i32
  }
  func.func @transform_3(%arg0: i32, %arg1: i32) -> (i32, i32, i32) {
    %c0_i32 = arith.constant 0 : i32
    %c0_i32_0 = arith.constant 0 : i32
    return %arg0, %c0_i32, %arg1 : i32, i32, i32
  }
}

</mosaic_0001>

<llo_original>
// kernel: tpu_custom_call.1
$region0: #{tpu_custom_call.1}
  #allocation0 [shape = 'u32[]', space=smem, size = 0x4, offset = 0x4, fixed_abs, tag = 'smem constant byte address 0x4 - core index']
  #allocation1 [shape = 'u32[72,128]{1,0:T(1,128)}', space=vmem, size = 0x9000, scoped, tag = 'internal scratch']
  %s0 = inlined_call_operand.hbm [shape: f32[2,4,256], index: 0, kind: input, shape index: {}]
  %s1 = inlined_call_operand.vmem [shape: f32[1,4,1], index: 1, kind: input, shape index: {}]
  %s2 = inlined_call_operand.vmem [shape: f32[1,4,1], index: 2, kind: input, shape index: {}]
  %s3 = inlined_call_operand.hbm [shape: f32[2,4,256], index: 3, kind: output, shape index: {}]
  %s4 = sld [smem:[#allocation0]]
  $region49: #{tpu_custom_call.1} parent=0
    _
  %s6 = ssub.s32 1, %s4
  %s7 = scalar_select 0, %s6, %s4
  $region1: #{tpu_custom_call.1} parent=0
    #allocation2 [shape = 'u8[8192]{0}', space=vmem, size = 0x2000, scoped, tag = 'input window, operand 0']
    #allocation3 [shape = 's32[2]{0}', space=sflag, size = 0x8, scoped, tag = 'scoped memory for tpu_custom_call.1']
    #allocation4 [shape = 's32[2]{0}', space=sflag, size = 0x8, scoped, tag = 'scoped memory for tpu_custom_call.1']
    #allocation5 [shape = 'u8[8192]{0}', space=vmem, size = 0x2000, scoped, tag = 'output window, operand 0']
    %8 = vsyncpa [#allocation3], 0
    %s9 = scalar_lea.sflag [#allocation3], 1
    %10 = vsyncpa %s9, 0
    %11 = vsyncpa [#allocation4], 0
    %s12 = scalar_lea.sflag [#allocation4], 1
    %13 = vsyncpa %s12, 0
    loop: start=0, step=1, limit=4
    $region2: #{tpu_custom_call.1} parent=1 // loop_pre_header
      _
    $region3: #{tpu_custom_call.1} parent=1 // loop_header
      %s15 = sphi 0, %s19
      %p16 = scmp.ge.s32.totalorder %s15, 4
      %s22 = sphi 0, %s34
      %s23 = sphi 0, %s30
      %s24 = sphi 0, %s22
      %s25 = sphi 0, %s23
      %s26 = sphi 0, %s24
      %s27 = sphi 0, %s25
      %s39 = sphi 0, %s41
      %s42 = sphi 0, %s39
      %s43 = sphi 0, %s42
      %s59 = sphi 0, %s43
      %s63 = sphi 0, %s63
      %s65 = sphi 0, %s63
      %s66 = sphi 0, %s65
      %s80 = sphi 0, %s66
      %s84 = sphi 0, %s84
      %s86 = sphi 0, %s84
      %s87 = sphi 0, %s86
      %s101 = sphi 0, %s87
      %s109 = sphi 0, %s111
      %s112 = sphi 0, %s109
      %s113 = sphi 0, %s112
      %s129 = sphi 0, %s113
    $region4: #{tpu_custom_call.1} parent=1 // loop_header_branch
      %18 = sbr.rel (%p16) target = $region8
    $region5: #{tpu_custom_call.1} parent=1 // loop_body
      %s20 = ssub.s32 %s15, 1
      %s21 = ssub.s32 %s15, 2
      %s28 = sadd.s32 1, %s23
      %p29 = scmp.ge.s32.totalorder %s28, 1
      %s30 = scalar_select %p29, 0, %s28
      %s31 = sadd.s32 1, %s22
      %s32 = scalar_select %p29, %s31, %s22
      %p33 = scmp.ge.s32.totalorder %s32, 2
      %s34 = scalar_select %p33, 0, %s32
      %s35 = ssub.s32 %s22, %s34
      %s36 = ssub.s32 %s23, %s30
      %s37 = sor.u32 %s35, %s36
      %p38 = scmp.eq.s32.totalorder %s37, 0
      %s40 = sadd.s32 %s39, 1
      %s41 = scalar_select %p38, %s39, %s40
      %p44 = pneg %p38
      %p45 = scmp.eq.s32.totalorder %s15, 1
      %p46 = por %p44, %p45
      %p47 = scmp.ne.s32.totalorder %s39, %s42
      %p48 = scmp.eq.s32.totalorder %s15, 0
      %p49 = por %p47, %p48
      %p50 = scmp.ne.s32.totalorder %s39, %s42
      %p51 = scmp.eq.s32.totalorder %s20, 1
      %p52 = por %p50, %p51
      %p53 = scmp.ne.s32.totalorder %s42, %s43
      %p54 = scmp.eq.s32.totalorder %s20, 0
      %p55 = por %p53, %p54
      %p56 = scmp.ne.s32.totalorder %s42, %s43
      %p57 = scmp.eq.s32.totalorder %s21, 1
      %p58 = por %p56, %p57
      %p60 = scmp.ne.s32.totalorder %s43, %s59
      %p61 = scmp.eq.s32.totalorder %s21, 0
      %p62 = por %p60, %p61
      %s64 = sadd.s32 %s63, 1
      %p67 = scmp.eq.s32.totalorder %s15, 1
      %p68 = scmp.ne.s32.totalorder %s63, %s65
      %p69 = scmp.eq.s32.totalorder %s15, 0
      %p70 = por %p68, %p69
      %p71 = scmp.ne.s32.totalorder %s63, %s65
      %p72 = scmp.eq.s32.totalorder %s20, 1
      %p73 = por %p71, %p72
      %p74 = scmp.ne.s32.totalorder %s65, %s66
      %p75 = scmp.eq.s32.totalorder %s20, 0
      %p76 = por %p74, %p75
      %p77 = scmp.ne.s32.totalorder %s65, %s66
      %p78 = scmp.eq.s32.totalorder %s21, 1
      %p79 = por %p77, %p78
      %p81 = scmp.ne.s32.totalorder %s66, %s80
      %p82 = scmp.eq.s32.totalorder %s21, 0
      %p83 = por %p81, %p82
      %s85 = sadd.s32 %s84, 1
      %p88 = scmp.eq.s32.totalorder %s15, 1
      %p89 = scmp.ne.s32.totalorder %s84, %s86
      %p90 = scmp.eq.s32.totalorder %s15, 0
      %p91 = por %p89, %p90
      %p92 = scmp.ne.s32.totalorder %s84, %s86
      %p93 = scmp.eq.s32.totalorder %s20, 1
      %p94 = por %p92, %p93
      %p95 = scmp.ne.s32.totalorder %s86, %s87
      %p96 = scmp.eq.s32.totalorder %s20, 0
      %p97 = por %p95, %p96
      %p98 = scmp.ne.s32.totalorder %s86, %s87
      %p99 = scmp.eq.s32.totalorder %s21, 1
      %p100 = por %p98, %p99
      %p102 = scmp.ne.s32.totalorder %s87, %s101
      %p103 = scmp.eq.s32.totalorder %s21, 0
      %p104 = por %p102, %p103
      %s105 = ssub.s32 %s22, %s34
      %s106 = ssub.s32 %s23, %s30
      %s107 = sor.u32 %s105, %s106
      %p108 = scmp.eq.s32.totalorder %s107, 0
      %s110 = sadd.s32 %s109, 1
      %s111 = scalar_select %p108, %s109, %s110
      %p114 = pneg %p108
      %p115 = scmp.eq.s32.totalorder %s15, 1
      %p116 = por %p114, %p115
      %p117 = scmp.ne.s32.totalorder %s109, %s112
      %p118 = scmp.eq.s32.totalorder %s15, 0
      %p119 = por %p117, %p118
      %p120 = scmp.ne.s32.totalorder %s109, %s112
      %p121 = scmp.eq.s32.totalorder %s20, 1
      %p122 = por %p120, %p121
      %p123 = scmp.ne.s32.totalorder %s112, %s113
      %p124 = scmp.eq.s32.totalorder %s20, 0
      %p125 = por %p123, %p124
      %p126 = scmp.ne.s32.totalorder %s112, %s113
      %p127 = scmp.eq.s32.totalorder %s21, 1
      %p128 = por %p126, %p127
      %p130 = scmp.ne.s32.totalorder %s113, %s129
      %p131 = scmp.eq.s32.totalorder %s21, 0
      %p132 = por %p130, %p131
      %p133 = scmp.le.s32.totalorder 1, %s15
      %p134 = scmp.lt.s32.totalorder %s15, 3
      %p135 = pnand %p133, %p134
      %p136 = pneg %p135
      // Predicated region
      $region9: #{tpu_custom_call.1} parent=5 // pred_check
        _
      $region10: #{tpu_custom_call.1} parent=5 // pred_check_branch
        %138 = sbr.rel (%p135) target = $region12
      $region11: #{tpu_custom_call.1} parent=5 // pred_region
        %s139 = ssub.s32 %s15, 1
        // Predicated region
        $region13: #{tpu_custom_call.1} parent=11 // pred_check
          %p140 = pneg %p76
        $region14: #{tpu_custom_call.1} parent=11 // pred_check_branch
          %142 = sbr.rel (%p140) target = $region16
        $region15: #{tpu_custom_call.1} parent=11 // pred_region
          _
        $region16: #{tpu_custom_call.1} parent=11 // pred_fallthru
          _
        // Predicated region
        $region17: #{tpu_custom_call.1} parent=11 // pred_check
          %p143 = pneg %p97
        $region18: #{tpu_custom_call.1} parent=11 // pred_check_branch
          %145 = sbr.rel (%p143) target = $region20
        $region19: #{tpu_custom_call.1} parent=11 // pred_region
          _
        $region20: #{tpu_custom_call.1} parent=11 // pred_fallthru
          _
      $region12: #{tpu_custom_call.1} parent=5 // pred_fallthru
        _
      %p146 = scmp.lt.s32.totalorder %s15, 2
      // Predicated region
      $region21: #{tpu_custom_call.1} parent=5 // pred_check
        %p147 = pneg %p146
      $region22: #{tpu_custom_call.1} parent=5 // pred_check_branch
        %149 = sbr.rel (%p147) target = $region24
      $region23: #{tpu_custom_call.1} parent=5 // pred_region
        // Predicated region
        $region25: #{tpu_custom_call.1} parent=23 // pred_check
          %p150 = pneg %p49
        $region26: #{tpu_custom_call.1} parent=23 // pred_check_branch
          %152 = sbr.rel (%p150) target = $region28
        $region27: #{tpu_custom_call.1} parent=23 // pred_region
          %s153 = sand.u32 %s39, 1
          %s154 = scalar_lea.sflag [#allocation3], %s153
          %s155 = sand.u32 %s39, 1
          %s156 = smul.addr %s155, 8
          %s157 = scalar_lea.vmem [#allocation2], %s156
          %s158 = smul.u32 2, %s23
          %160 = vsyncadd %s154, 0
          %s161 = smul.addr %s22, 2
          %s162 = sadd.s32 %s158, %s161
          %s163 = smul.addr %s162, 4
          %s164 = scalar_lea.hbm %s0, %s163
          %s166 = sshll.u32 %s164, 4
          %s167 = int_to_ptr.hbm [resolvable:$true] %s166
          %s168 = sshll.u32 %s157, 4
          %s169 = int_to_ptr.vmem [resolvable:$true] %s168
          %171 = dma.hbm_to_vmem [thread:$0]  %s167, 128, %s169, %s154
        $region28: #{tpu_custom_call.1} parent=23 // pred_fallthru
          _
      $region24: #{tpu_custom_call.1} parent=5 // pred_fallthru
        _
      %p172 = scmp.le.s32.totalorder 1, %s15
      %p173 = scmp.lt.s32.totalorder %s15, 3
      %p174 = pnand %p172, %p173
      %p175 = pneg %p174
      // Predicated region
      $region29: #{tpu_custom_call.1} parent=5 // pred_check
        _
      $region30: #{tpu_custom_call.1} parent=5 // pred_check_branch
        %177 = sbr.rel (%p174) target = $region32
      $region31: #{tpu_custom_call.1} parent=5 // pred_region
        %s178 = ssub.s32 %s15, 1
        %s179 = sand.u32 %s42, 1
        %s180 = scalar_lea.sflag [#allocation3], %s179
        %s181 = sand.u32 %s42, 1
        %s182 = smul.addr %s181, 8
        %s183 = scalar_lea.vmem [#allocation2], %s182
        // Predicated region
        $region33: #{tpu_custom_call.1} parent=31 // pred_check
          %p184 = pneg %p55
        $region34: #{tpu_custom_call.1} parent=31 // pred_check_branch
          %186 = sbr.rel (%p184) target = $region36
        $region35: #{tpu_custom_call.1} parent=31 // pred_region
          %188 = dma.done %s180, 128
        $region36: #{tpu_custom_call.1} parent=31 // pred_fallthru
          _
        %s189 = sand.u32 %s42, 1
        %s190 = scalar_lea.sflag [#allocation3], %s189
        %s191 = sand.u32 %s42, 1
        %s192 = smul.addr %s191, 8
        %s193 = scalar_lea.vmem [#allocation2], %s192
        %p194 = pneg %p55
        %p195 = pneg %p52
        %p196 = pneg %p76
        %p197 = pneg %p73
        %p198 = pneg %p97
        %p199 = pneg %p94
        %p200 = pneg %p125
        %p201 = pneg %p122
        %s202 = sand.u32 %s112, 1
        %s203 = scalar_lea.sflag [#allocation4], %s202
        %s204 = sand.u32 %s112, 1
        %s205 = smul.addr %s204, 8
        %s206 = scalar_lea.vmem [#allocation5], %s205
        %s207 = smul.u32 2, %s25
        %s208 = smul.u32 2, %s25
        %v209 = vld [vmem:[%s183] sm:$0xff]
        %v210 = vmul.f32 %v209, %v209
        %212 = vst [vmem:[#allocation1] ss:$2 sm:$0xff] %v210
        %v213 = vld.sshfl [vmem:[#allocation1] sm:$0xff pattern:$0x75316420]
        %v214 = vld.sshfl [vmem:[#allocation1 + $0x8] sm:$0xff pattern:$0x75316420]
        %vm217 = vcmask 1043456
        %v218 = vsel %vm217, %v213, 0.0
        %v219 = vrot.slane %v218, 4
        %v220 = vadd.f32 %v218, %v219
        %v221 = vrot.slane %v220, 2
        %v222 = vadd.f32 %v220, %v221
        %v223 = vrot.slane %v222, 1
        %v224 = vadd.f32 %v222, %v223
        %v225 = vsel %vm217, %v214, 0.0
        %v226 = vrot.slane %v225, 4
        %v227 = vadd.f32 %v225, %v226
        %v228 = vrot.slane %v227, 2
        %v229 = vadd.f32 %v227, %v228
        %v230 = vrot.slane %v229, 1
        %v231 = vadd.f32 %v229, %v230
        %v232 = vrcp.pop 4.0
        %v233 = vmul.f32 4.0, %v232
        %v234 = vsub.f32 1.0, %v233
        %v235 = vmul.f32 %v232, %v234
        %v236 = vadd.f32 %v232, %v235
        %vm237 = vweird.f32 %v232
        %v238 = vsel %vm237, %v232, %v236
        %v239 = vmul.f32 %v224, %v238
        %v240 = vmul.f32 %v231, %v238
        %v241 = vadd.f32 %v239, 1e-07
        %v242 = vadd.f32 %v240, 1e-07
        %v243 = vrsqrt.pop %v241
        %v244 = vmul.f32 %v243, %v241
        %v245 = vmul.f32 %v244, %v243
        %v246 = vmul.f32 0.5, %v245
        %v247 = vsub.f32 1.5, %v246
        %v248 = vmul.f32 %v243, %v247
        %vm249 = vweird.f32 %v241
        %vm250 = vweird.f32 %v243
        %vm251 = vmor %vm249, %vm250
        %v252 = vsel %vm251, %v243, %v248
        %v253 = vrsqrt.pop %v242
        %v254 = vmul.f32 %v253, %v242
        %v255 = vmul.f32 %v254, %v253
        %v256 = vmul.f32 0.5, %v255
        %v257 = vsub.f32 1.5, %v256
        %v258 = vmul.f32 %v253, %v257
        %vm259 = vweird.f32 %v242
        %vm260 = vweird.f32 %v253
        %vm261 = vmor %vm259, %vm260
        %v262 = vsel %vm261, %v253, %v258
        %v265 = vrot.slane %v262, 4
        %v266 = vsel %vm217, %v252, %v265
        %v268 = vmul.f32 %v209, %v266
        %v269 = vld [vmem:[%s1] sm:$0xf]
        %271 = vset.pattern.permute.xlu0 0
        %272 = vperm.xlu0 %271, %v269
        %v273 = vpop.permute.xlu0 %272
        %v275 = vunpack.c.l.s4 839922192
        %v276 = vunpack.c.0.s8 %v275
        %v277 = vperm.slane %v273, %v276
        %v279 = vmul.f32 %v268, %v277
        %v280 = vld [vmem:[%s2] sm:$0xf]
        %282 = vset.pattern.permute.xlu0 0
        %283 = vperm.xlu0 %282, %v280
        %v284 = vpop.permute.xlu0 %283
        %v286 = vunpack.c.l.s4 839922192
        %v287 = vunpack.c.0.s8 %v286
        %v288 = vperm.slane %v284, %v287
        %v290 = vadd.f32 %v279, %v288
        %291 = vst [vmem:[%s206] sm:$0xff] %v290
        %s292 = sand.u32 %s112, 1
        %s293 = scalar_lea.sflag [#allocation4], %s292
        %s294 = sand.u32 %s112, 1
        %s295 = smul.addr %s294, 8
        %s296 = scalar_lea.vmem [#allocation5], %s295
        // Predicated region
        $region37: #{tpu_custom_call.1} parent=31 // pred_check
          %p297 = pneg %p122
        $region38: #{tpu_custom_call.1} parent=31 // pred_check_branch
          %299 = sbr.rel (%p297) target = $region40
        $region39: #{tpu_custom_call.1} parent=31 // pred_region
          %s300 = smul.u32 2, %s25
          %302 = vsyncadd %s293, 0
          %s303 = smul.addr %s24, 2
          %s304 = sadd.s32 %s300, %s303
          %s305 = smul.addr %s304, 4
          %s306 = scalar_lea.hbm %s3, %s305
          %s308 = sshll.u32 %s296, 4
          %s309 = int_to_ptr.vmem [resolvable:$true] %s308
          %s310 = sshll.u32 %s306, 4
          %s311 = int_to_ptr.hbm [resolvable:$true] %s310
          %313 = dma.vmem_to_hbm [thread:$0]  %s309, 128, %s311, %s293
        $region40: #{tpu_custom_call.1} parent=31 // pred_fallthru
          _
      $region32: #{tpu_custom_call.1} parent=5 // pred_fallthru
        _
      %p314 = scmp.le.s32.totalorder 2, %s15
      // Predicated region
      $region41: #{tpu_custom_call.1} parent=5 // pred_check
        %p315 = pneg %p314
      $region42: #{tpu_custom_call.1} parent=5 // pred_check_branch
        %317 = sbr.rel (%p315) target = $region44
      $region43: #{tpu_custom_call.1} parent=5 // pred_region
        %s318 = ssub.s32 %s15, 2
        // Predicated region
        $region45: #{tpu_custom_call.1} parent=43 // pred_check
          %p319 = pneg %p128
        $region46: #{tpu_custom_call.1} parent=43 // pred_check_branch
          %321 = sbr.rel (%p319) target = $region48
        $region47: #{tpu_custom_call.1} parent=43 // pred_region
          %s322 = sand.u32 %s113, 1
          %s323 = scalar_lea.sflag [#allocation4], %s322
          %s324 = sand.u32 %s113, 1
          %s325 = smul.addr %s324, 8
          %s326 = scalar_lea.vmem [#allocation5], %s325
          %328 = dma.done %s323, 128
        $region48: #{tpu_custom_call.1} parent=43 // pred_fallthru
          _
      $region44: #{tpu_custom_call.1} parent=5 // pred_fallthru
        _
    $region6: #{tpu_custom_call.1} parent=1 // loop_footer
      %s19 = sadd.s32 1, %s15
    $region7: #{tpu_custom_call.1} parent=1 // loop_footer_branch
      %14 = sbr.rel target = $region3
    $region8: #{tpu_custom_call.1} parent=1 // loop_exit
      _
    %329 = vsyncpa [#allocation3], 1
    %s330 = scalar_lea.sflag [#allocation3], 1
    %331 = vsyncpa %s330, 1
    %332 = vsyncpa [#allocation4], 1
    %s333 = scalar_lea.sflag [#allocation4], 1
    %334 = vsyncpa %s333, 1

</llo_original>
